<compile_context>
chip_gen: v5e
topology: v5e:2x2
jax: 0.10.0
libtpu: 0.0.40
codegen_flags: <defaults>
</compile_context>

<pallas_src>
from functools import partial

import jax
import jax.numpy as jnp
from jax.experimental import pallas as pl
from jax.experimental.pallas import tpu as pltpu


def _round_up(a, b):
    return (a + b - 1) // b * b


def _pick_row_tile(M, m_tile, min_blocks=2):
    """Row tile: multiple of 8, capped by m_tile, split into >=2 blocks when M allows
    (v7x has 2 TensorCores); falls back to a single full-extent block for tiny M."""
    m = _round_up(min(m_tile, M), 8)
    if M >= 8 * min_blocks:
        m = min(m, _round_up(pl.cdiv(M, min_blocks), 8))
    if m >= M:
        return M            # full-extent block is always a legal block shape
    return m


# ---------------------------------------------------------------------------
# Fused level kernel:
#   emb = x @ W_emb_rep + b_emb_rep      (patch conv as GEMM, already head-repeated)
#   tok = LayerNorm(emb) * gamma + beta  (stats over repeated row == stats over D)
#   nxt = emb @ W_post_ext + b_post      (1x1 post_conv; zero rows beyond D)
# ---------------------------------------------------------------------------
def _embed_norm(x, we, be, g, b, *, eps, inv_e):
    emb = jnp.dot(x, we, preferred_element_type=jnp.float32) + be
    mean = jnp.sum(emb, axis=-1, keepdims=True) * inv_e
    cen = emb - mean
    var = jnp.sum(cen * cen, axis=-1, keepdims=True) * inv_e   # two-pass variance
    tok = cen * jax.lax.rsqrt(var + eps) * g + b
    return emb, tok


def level_kernel(x_ref, we_ref, be_ref, g_ref, b_ref, wp_ref, bp_ref,
                 tok_ref, nxt_ref, *, eps, inv_e):
    emb, tok = _embed_norm(x_ref[...], we_ref[...], be_ref[...],
                           g_ref[...], b_ref[...], eps=eps, inv_e=inv_e)
    tok_ref[...] = tok.astype(tok_ref.dtype)
    # Post-conv on the un-normalized embedding.  For bf16 inputs emb is rounded back to
    # the operand dtype before the MXU (intentional, matches the module's dtype flow).
    nxt = jnp.dot(emb.astype(wp_ref.dtype), wp_ref[...],
                  preferred_element_type=jnp.float32) + bp_ref[...]
    nxt_ref[...] = nxt.astype(nxt_ref.dtype)


def level_kernel_last(x_ref, we_ref, be_ref, g_ref, b_ref, tok_ref, *, eps, inv_e):
    _, tok = _embed_norm(x_ref[...], we_ref[...], be_ref[...],
                         g_ref[...], b_ref[...], eps=eps, inv_e=inv_e)
    tok_ref[...] = tok.astype(tok_ref.dtype)


def level_pallas(xp, w_emb_rep, b_emb_rep, w_post_ext, b_post, gamma, beta, *,
                 eps, m_tile, need_nxt):
    M, K = xp.shape
    E = w_emb_rep.shape[1]
    C = w_post_ext.shape[1]
    itemsize = xp.dtype.itemsize

    row_bytes = (K + E + (C if need_nxt else 0)) * itemsize
    # Keep double-buffered activation tiles <= ~40 MiB (v7x has 64 MiB physical VMEM).
    m_cap = max(8, (40 * 1024 * 1024) // (2 * row_bytes) // 8 * 8)
    m_eff = _pick_row_tile(M, min(m_tile, m_cap))
    grid = (pl.cdiv(M, m_eff),)

    x_spec = pl.BlockSpec((m_eff, K), lambda i: (i, 0))     # full-extent lane dim: no pad copy
    # TODO(synk): pipeline_mode=pl.Buffered(1) on the resident weight specs would halve
    # their VMEM footprint; only relevant for large patch/D on v7x, default kept for safety.
    we_spec = pl.BlockSpec((K, E), lambda i: (0, 0))
    row_e_spec = pl.BlockSpec((1, E), lambda i: (0, 0))
    tok_spec = pl.BlockSpec((m_eff, E), lambda i: (i, 0))

    w_bytes = int(w_emb_rep.size * itemsize
                  + (b_emb_rep.size + gamma.size + beta.size) * 4)
    flops = 2 * M * K * E + 8 * M * E
    bytes_acc = M * (K + E) * itemsize + w_bytes
    if need_nxt:
        w_bytes += int(w_post_ext.size * itemsize + b_post.size * 4)
        flops += 2 * M * E * C
        bytes_acc += M * C * itemsize

    vmem_limit = int(min(64 * 1024 * 1024,
                         max(16 * 1024 * 1024,
                             2 * m_eff * row_bytes + 2 * w_bytes + (4 << 20))))
    cparams = pltpu.CompilerParams(dimension_semantics=("parallel",),
                                   vmem_limit_bytes=vmem_limit)
    cost = pl.CostEstimate(flops=int(flops), transcendentals=int(M),
                           bytes_accessed=int(bytes_acc))

    if need_nxt:
        tok, nxt = pl.pallas_call(
            partial(level_kernel, eps=eps, inv_e=1.0 / E),
            out_shape=(jax.ShapeDtypeStruct((M, E), xp.dtype),
                       jax.ShapeDtypeStruct((M, C), xp.dtype)),
            grid_spec=pltpu.PrefetchScalarGridSpec(
                num_scalar_prefetch=0, grid=grid,
                in_specs=[x_spec, we_spec, row_e_spec, row_e_spec, row_e_spec,
                          pl.BlockSpec((E, C), lambda i: (0, 0)),
                          pl.BlockSpec((1, C), lambda i: (0, 0))],
                out_specs=(tok_spec,
                           pl.BlockSpec((m_eff, C), lambda i: (i, 0)))),
            compiler_params=cparams, cost_estimate=cost,
        )(xp, w_emb_rep, b_emb_rep, gamma, beta, w_post_ext, b_post)
        return tok, nxt

    tok = pl.pallas_call(
        partial(level_kernel_last, eps=eps, inv_e=1.0 / E),
        out_shape=jax.ShapeDtypeStruct((M, E), xp.dtype),
        grid_spec=pltpu.PrefetchScalarGridSpec(
            num_scalar_prefetch=0, grid=grid,
            in_specs=[x_spec, we_spec, row_e_spec, row_e_spec, row_e_spec],
            out_specs=tok_spec),
        compiler_params=cparams, cost_estimate=cost,
    )(xp, w_emb_rep, b_emb_rep, gamma, beta)
    return tok, None


# ---------------------------------------------------------------------------
# Plain-XLA path for tiny pyramid levels (pallas_call launch overhead dominates there).
# ---------------------------------------------------------------------------
def level_plain(xp, w_emb, b_emb, w_post, b_post, gamma, beta, *, heads, eps, need_nxt):
    emb = jnp.dot(xp, w_emb, preferred_element_type=jnp.float32) + b_emb   # (M, D) f32
    mean = jnp.mean(emb, axis=-1, keepdims=True)
    cen = emb - mean
    var = jnp.mean(cen * cen, axis=-1, keepdims=True)
    nrm = cen * jax.lax.rsqrt(var + eps)
    tok = (jnp.tile(nrm, (1, heads)) * gamma + beta).astype(xp.dtype)
    nxt = None
    if need_nxt:
        nxt = (jnp.dot(emb.astype(w_post.dtype), w_post,
                       preferred_element_type=jnp.float32) + b_post).astype(xp.dtype)
    return tok, nxt


# ---------------------------------------------------------------------------
# Full forward.  The recursive level structure depends only on static shapes, so the
# module's while loop is replicated exactly at trace time.
# ---------------------------------------------------------------------------
@partial(jax.jit, static_argnames=("patch", "num_heads", "repeat", "m_tile",
                                   "min_pallas_rows", "eps"))
def mg_patch_embed_forward(x, we, be, wp, bp, gamma, beta, *, patch, num_heads,
                           repeat=True, m_tile=1024, min_pallas_rows=512, eps=1e-5):
    B, Cin, _, _ = x.shape
    D = we.shape[0]
    heads = num_heads if repeat else 1
    E = D * heads
    K = Cin * patch * patch
    dt = x.dtype

    # Conv-as-GEMM weights; feature order (ki, kj, c) matches the NHWC patch extraction.
    W_emb = we.transpose(2, 3, 1, 0).reshape(K, D).astype(dt)      # (K, D)
    W_emb_rep = jnp.tile(W_emb, (1, heads))                        # (K, E): fused head-repeat
    b_emb = be.astype(jnp.float32).reshape(1, D)
    b_emb_rep = jnp.tile(b_emb, (1, heads))                        # (1, E)
    W_post = wp.reshape(Cin, D).T.astype(dt)                       # (D, Cin)
    W_post_ext = jnp.pad(W_post, ((0, E - D), (0, 0)))             # (E, Cin): zero rows >= D
    b_post = bp.astype(jnp.float32).reshape(1, Cin)
    g = gamma.astype(jnp.float32).reshape(1, E)
    b = beta.astype(jnp.float32).reshape(1, E)

    img = x.transpose(0, 2, 3, 1)          # NHWC once; all levels stay NHWC
    feat = []
    flag, flag_2 = True, True
    while flag:                            # exact replica of the module's loop logic
        flag = flag_2
        need_nxt = flag                    # another iteration runs iff the re-check passes
        H = img.shape[1]
        if H % patch != 0:
            pad = patch - H % patch        # inherited assumption: same pad on H and W
            img = jnp.pad(img, ((0, 0), (0, pad), (0, pad), (0, 0)))
        Hp, Wp = img.shape[1], img.shape[2]
        h, w = Hp // patch, Wp // patch
        M = B * h * w
        # TODO(synk): the patch-extraction transpose still materializes one HBM copy per
        # level; fully removing it needs an image-slab BlockSpec + in-kernel rearrange.
        patches = (img.reshape(B, h, patch, w, patch, Cin)
                      .transpose(0, 1, 3, 2, 4, 5)
                      .reshape(M, K))
        if M >= max(min_pallas_rows, 1):
            tok, nxt = level_pallas(patches, W_emb_rep, b_emb_rep, W_post_ext, b_post,
                                    g, b, eps=eps, m_tile=m_tile, need_nxt=need_nxt)
        else:
            tok, nxt = level_plain(patches, W_emb, b_emb, W_post, b_post, g, b,
                                   heads=heads, eps=eps, need_nxt=need_nxt)
        feat.append(tok.reshape(B, h * w, E))
        if need_nxt:
            img = nxt.reshape(B, h, w, Cin)    # next-level NHWC image, zero transposes
        flag_2 = h >= patch

    # LayerNorm + head-repeat already applied inside each level kernel.
    return jnp.concatenate(feat, axis=1)       # (B, N, E)


# ---------------------------------------------------------------------------
# Pure-JAX reference reproducing the PyTorch module semantics (independent path:
# lax convolutions + explicit tile + LayerNorm).
# ---------------------------------------------------------------------------
def ref_forward(x, we, be, wp, bp, gamma, beta, *, patch, num_heads,
                repeat=True, eps=1e-5):
    feat = []
    flag, flag_2 = True, True
    while flag:
        flag = flag_2
        H = x.shape[2]
        if H % patch != 0:
            pad = patch - H % patch
            x = jnp.pad(x, ((0, 0), (0, 0), (0, pad), (0, pad)))
        x = jax.lax.conv_general_dilated(
            x, we, (patch, patch), "VALID",
            dimension_numbers=("NCHW", "OIHW", "NCHW")) + be.reshape(1, -1, 1, 1)
        B, D, h, w = x.shape
        feat.append(x.reshape(B, D, h * w))
        x = jax.lax.conv_general_dilated(
            x, wp, (1, 1), "VALID",
            dimension_numbers=("NCHW", "OIHW", "NCHW")) + bp.reshape(1, -1, 1, 1)
        flag_2 = x.shape[2] >= patch
    y = jnp.concatenate(feat, axis=-1).transpose(0, 2, 1)
    if repeat:
        y = jnp.tile(y, (1, 1, num_heads))
    mean = y.mean(-1, keepdims=True)
    var = ((y - mean) ** 2).mean(-1, keepdims=True)
    return (y - mean) / jnp.sqrt(var + eps) * gamma + beta


if __name__ == "__main__":
    key = jax.random.PRNGKey(0)
    in_chans, embed_dim, num_heads, B, patch = 3, 128, 4, 2, 4
    D = embed_dim // num_heads                     # repeat_dims_to_num_heads=True

    kp, ka, kb = jax.random.split(key, 3)
    k1, k2, k3, k4, k5, k6 = jax.random.split(kp, 6)
    we = 0.1 * jax.random.normal(k1, (D, in_chans, patch, patch), jnp.float32)
    be = 0.1 * jax.random.normal(k2, (D,), jnp.float32)
    wp = 0.1 * jax.random.normal(k3, (in_chans, D, 1, 1), jnp.float32)
    bp = 0.1 * jax.random.normal(k4, (in_chans,), jnp.float32)
    gamma = 1.0 + 0.1 * jax.random.normal(k5, (embed_dim,), jnp.float32)
    beta = 0.1 * jax.random.normal(k6, (embed_dim,), jnp.float32)
    params = (we, be, wp, bp, gamma, beta)

    # Config A: 32x32 image -> 64 + 4 + 1 = 69 tokens per image.  Level 0 (128 rows)
    # runs the fused Pallas kernel on a 2-block grid; the tiny levels use the bypass.
    xa = jax.random.normal(ka, (B, in_chans, 32, 32), jnp.float32)
    out_a = mg_patch_embed_forward(xa, *params, patch=patch, num_heads=num_heads,
                                   repeat=True, min_pallas_rows=64)
    out_a = jax.block_until_ready(out_a)
    ref_a = ref_forward(xa, *params, patch=patch, num_heads=num_heads, repeat=True)
    assert out_a.shape == (B, 69, embed_dim), out_a.shape
    assert jnp.allclose(out_a, ref_a, atol=1e-3, rtol=1e-3), \
        float(jnp.max(jnp.abs(out_a - ref_a)))

    # Config B: 16x16 image (18 tokens), all levels forced through Pallas — exercises
    # the tiny full-extent row blocks and the no-post-conv kernel of the final level.
    xb = jax.random.normal(kb, (B, in_chans, 16, 16), jnp.float32)
    out_b = mg_patch_embed_forward(xb, *params, patch=patch, num_heads=num_heads,
                                   repeat=True, min_pallas_rows=0)
    out_b = jax.block_until_ready(out_b)
    ref_b = ref_forward(xb, *params, patch=patch, num_heads=num_heads, repeat=True)
    assert out_b.shape == (B, 18, embed_dim), out_b.shape
    assert jnp.allclose(out_b, ref_b, atol=1e-3, rtol=1e-3), \
        float(jnp.max(jnp.abs(out_b - ref_b)))

    print("KERNEL_OK")
</pallas_src>

<mosaic_0001>
module attributes {stable_mosaic.version = 11 : i64} {
  func.func @level_kernel(%arg0: i32, %arg1: memref<64x48xf32, #tpu.memory_space<vmem>>, %arg2: memref<48x128xf32, #tpu.memory_space<vmem>>, %arg3: memref<1x128xf32, #tpu.memory_space<vmem>>, %arg4: memref<1x128xf32, #tpu.memory_space<vmem>>, %arg5: memref<1x128xf32, #tpu.memory_space<vmem>>, %arg6: memref<128x3xf32, #tpu.memory_space<vmem>>, %arg7: memref<1x3xf32, #tpu.memory_space<vmem>>, %arg8: memref<64x128xf32, #tpu.memory_space<vmem>>, %arg9: memref<64x3xf32, #tpu.memory_space<vmem>>) attributes {dimension_semantics = [#tpu.dimension_semantics<parallel>], iteration_bounds = array<i64: 2>, scalar_prefetch = 0 : i64, scratch_operands = 0 : i64, tpu.core_type = #tpu.core_type<tc>, window_params = [{transform_indices = @transform_0, window_bounds = array<i64: 64, 48>}, {pipeline_mode = #tpu.pipeline_mode<synchronous>, transform_indices = @transform_1, window_bounds = array<i64: 48, 128>}, {pipeline_mode = #tpu.pipeline_mode<synchronous>, transform_indices = @transform_2, window_bounds = array<i64: 1, 128>}, {pipeline_mode = #tpu.pipeline_mode<synchronous>, transform_indices = @transform_3, window_bounds = array<i64: 1, 128>}, {pipeline_mode = #tpu.pipeline_mode<synchronous>, transform_indices = @transform_4, window_bounds = array<i64: 1, 128>}, {pipeline_mode = #tpu.pipeline_mode<synchronous>, transform_indices = @transform_5, window_bounds = array<i64: 128, 3>}, {pipeline_mode = #tpu.pipeline_mode<synchronous>, transform_indices = @transform_6, window_bounds = array<i64: 1, 3>}, {transform_indices = @transform_7, window_bounds = array<i64: 64, 128>}, {transform_indices = @transform_8, window_bounds = array<i64: 64, 3>}]} {
    %c0 = arith.constant 0 : index
    %c0_0 = arith.constant 0 : index
    %0 = vector.load %arg1[%c0, %c0_0] : memref<64x48xf32, #tpu.memory_space<vmem>>, vector<64x48xf32>
    %c0_1 = arith.constant 0 : index
    %c0_2 = arith.constant 0 : index
    %1 = vector.load %arg2[%c0_1, %c0_2] : memref<48x128xf32, #tpu.memory_space<vmem>>, vector<48x128xf32>
    %c0_3 = arith.constant 0 : index
    %c0_4 = arith.constant 0 : index
    %2 = vector.load %arg3[%c0_3, %c0_4] : memref<1x128xf32, #tpu.memory_space<vmem>>, vector<1x128xf32>
    %c0_5 = arith.constant 0 : index
    %c0_6 = arith.constant 0 : index
    %3 = vector.load %arg4[%c0_5, %c0_6] : memref<1x128xf32, #tpu.memory_space<vmem>>, vector<1x128xf32>
    %c0_7 = arith.constant 0 : index
    %c0_8 = arith.constant 0 : index
    %4 = vector.load %arg5[%c0_7, %c0_8] : memref<1x128xf32, #tpu.memory_space<vmem>>, vector<1x128xf32>
    %cst = arith.constant dense<0.000000e+00> : vector<64x128xf32>
    %5 = tpu.matmul %0, %1, %cst {dimension_numbers = #tpu.dot_dimension_numbers<[1], [0], [0], [1], [0, 0, 1, 1], [], []>} : vector<64x48xf32>, vector<48x128xf32>, vector<64x128xf32> -> vector<64x128xf32>
    %6 = vector.broadcast %2 : vector<1x128xf32> to vector<64x128xf32>
    %7 = arith.addf %5, %6 : vector<64x128xf32>
    %cst_9 = arith.constant dense<0.000000e+00> : vector<64xf32>
    %8 = vector.multi_reduction <add>, %7, %cst_9 [1] : vector<64x128xf32> to vector<64xf32>
    %9 = vector.shape_cast %8 : vector<64xf32> to vector<64x1xf32>
    %cst_10 = arith.constant 7.812500e-03 : f32
    %10 = vector.broadcast %cst_10 : f32 to vector<64x1xf32>
    %11 = arith.mulf %9, %10 : vector<64x1xf32>
    %12 = vector.broadcast %11 : vector<64x1xf32> to vector<64x128xf32>
    %13 = arith.subf %7, %12 : vector<64x128xf32>
    %14 = arith.mulf %13, %13 : vector<64x128xf32>
    %cst_11 = arith.constant dense<0.000000e+00> : vector<64xf32>
    %15 = vector.multi_reduction <add>, %14, %cst_11 [1] : vector<64x128xf32> to vector<64xf32>
    %16 = vector.shape_cast %15 : vector<64xf32> to vector<64x1xf32>
    %cst_12 = arith.constant 7.812500e-03 : f32
    %17 = vector.broadcast %cst_12 : f32 to vector<64x1xf32>
    %18 = arith.mulf %16, %17 : vector<64x1xf32>
    %cst_13 = arith.constant 9.99999974E-6 : f32
    %19 = vector.broadcast %cst_13 : f32 to vector<64x1xf32>
    %20 = arith.addf %18, %19 : vector<64x1xf32>
    %21 = math.rsqrt %20 : vector<64x1xf32>
    %22 = vector.broadcast %21 : vector<64x1xf32> to vector<64x128xf32>
    %23 = arith.mulf %13, %22 : vector<64x128xf32>
    %24 = vector.broadcast %3 : vector<1x128xf32> to vector<64x128xf32>
    %25 = arith.mulf %23, %24 : vector<64x128xf32>
    %26 = vector.broadcast %4 : vector<1x128xf32> to vector<64x128xf32>
    %27 = arith.addf %25, %26 : vector<64x128xf32>
    %c0_14 = arith.constant 0 : index
    %c0_15 = arith.constant 0 : index
    %28 = vector.load %arg8[%c0_14, %c0_15] : memref<64x128xf32, #tpu.memory_space<vmem>>, vector<64x128xf32>
    tpu.vector_store %arg8[%c0_14, %c0_15], %27 {strides = array<i32>} : memref<64x128xf32, #tpu.memory_space<vmem>>, vector<64x128xf32>,
    %c0_16 = arith.constant 0 : index
    %c0_17 = arith.constant 0 : index
    %29 = vector.load %arg6[%c0_16, %c0_17] : memref<128x3xf32, #tpu.memory_space<vmem>>, vector<128x3xf32>
    %cst_18 = arith.constant dense<0.000000e+00> : vector<64x3xf32>
    %30 = tpu.matmul %7, %29, %cst_18 {dimension_numbers = #tpu.dot_dimension_numbers<[1], [0], [0], [1], [0, 0, 1, 1], [], []>} : vector<64x128xf32>, vector<128x3xf32>, vector<64x3xf32> -> vector<64x3xf32>
    %c0_19 = arith.constant 0 : index
    %c0_20 = arith.constant 0 : index
    %31 = vector.load %arg7[%c0_19, %c0_20] : memref<1x3xf32, #tpu.memory_space<vmem>>, vector<1x3xf32>
    %32 = vector.broadcast %31 : vector<1x3xf32> to vector<64x3xf32>
    %33 = arith.addf %30, %32 : vector<64x3xf32>
    %c0_21 = arith.constant 0 : index
    %c0_22 = arith.constant 0 : index
    %34 = vector.load %arg9[%c0_21, %c0_22] : memref<64x3xf32, #tpu.memory_space<vmem>>, vector<64x3xf32>
    tpu.vector_store %arg9[%c0_21, %c0_22], %33 {strides = array<i32>} : memref<64x3xf32, #tpu.memory_space<vmem>>, vector<64x3xf32>,
    return
  }
  func.func @transform_0(%arg0: i32) -> (i32, i32) {
    %c0_i32 = arith.constant 0 : i32
    %c0_i32_0 = arith.constant 0 : i32
    return %arg0, %c0_i32 : i32, i32
  }
  func.func @transform_1(%arg0: i32) -> (i32, i32) {
    %c0_i32 = arith.constant 0 : i32
    %c0_i32_0 = arith.constant 0 : i32
    %c0_i32_1 = arith.constant 0 : i32
    return %c0_i32, %c0_i32_0 : i32, i32
  }
  func.func @transform_2(%arg0: i32) -> (i32, i32) {
    %c0_i32 = arith.constant 0 : i32
    %c0_i32_0 = arith.constant 0 : i32
    %c0_i32_1 = arith.constant 0 : i32
    return %c0_i32, %c0_i32_0 : i32, i32
  }
  func.func @transform_3(%arg0: i32) -> (i32, i32) {
    %c0_i32 = arith.constant 0 : i32
    %c0_i32_0 = arith.constant 0 : i32
    %c0_i32_1 = arith.constant 0 : i32
    return %c0_i32, %c0_i32_0 : i32, i32
  }
  func.func @transform_4(%arg0: i32) -> (i32, i32) {
    %c0_i32 = arith.constant 0 : i32
    %c0_i32_0 = arith.constant 0 : i32
    %c0_i32_1 = arith.constant 0 : i32
    return %c0_i32, %c0_i32_0 : i32, i32
  }
  func.func @transform_5(%arg0: i32) -> (i32, i32) {
    %c0_i32 = arith.constant 0 : i32
    %c0_i32_0 = arith.constant 0 : i32
    %c0_i32_1 = arith.constant 0 : i32
    return %c0_i32, %c0_i32_0 : i32, i32
  }
  func.func @transform_6(%arg0: i32) -> (i32, i32) {
    %c0_i32 = arith.constant 0 : i32
    %c0_i32_0 = arith.constant 0 : i32
    %c0_i32_1 = arith.constant 0 : i32
    return %c0_i32, %c0_i32_0 : i32, i32
  }
  func.func @transform_7(%arg0: i32) -> (i32, i32) {
    %c0_i32 = arith.constant 0 : i32
    %c0_i32_0 = arith.constant 0 : i32
    return %arg0, %c0_i32 : i32, i32
  }
  func.func @transform_8(%arg0: i32) -> (i32, i32) {
    %c0_i32 = arith.constant 0 : i32
    %c0_i32_0 = arith.constant 0 : i32
    return %arg0, %c0_i32 : i32, i32
  }
}

</mosaic_0001>

<llo_original>
// kernel: mg_patch_embed_forward.1
$region0: #{mg_patch_embed_forward.1}
  #allocation0 [shape = 'u32[]', space=smem, size = 0x4, offset = 0x4, fixed_abs, tag = 'smem constant byte address 0x4 - core index']
  #allocation1 [shape = 'u32[72,128]{1,0:T(1,128)}', space=vmem, size = 0x9000, scoped, tag = 'internal scratch']
  %s0 = inlined_call_operand.vmem [shape: f32[128,48], index: 0, kind: input, shape index: {}]
  %s1 = inlined_call_operand.vmem [shape: f32[48,128], index: 1, kind: input, shape index: {}]
  %s2 = inlined_call_operand.vmem [shape: f32[1,128], index: 2, kind: input, shape index: {}]
  %s3 = inlined_call_operand.vmem [shape: f32[1,128], index: 3, kind: input, shape index: {}]
  %s4 = inlined_call_operand.vmem [shape: f32[1,128], index: 4, kind: input, shape index: {}]
  %s5 = inlined_call_operand.vmem [shape: f32[128,3], index: 5, kind: input, shape index: {}]
  %s6 = inlined_call_operand.vmem [shape: f32[1,3], index: 6, kind: input, shape index: {}]
  %s7 = inlined_call_operand.vmem [shape: f32[128,128], index: 7, kind: output, shape index: {0}]
  %s8 = inlined_call_operand.vmem [shape: f32[128,3], index: 8, kind: output, shape index: {1}]
  %9 = xla_tuple %s7, %s8
  %s10 = sld [smem:[#allocation0]]
  $region69: #{mg_patch_embed_forward.1} parent=0
    _
  %s12 = ssub.s32 1, %s10
  %s13 = scalar_select 0, %s12, %s10
  loop: start=0, step=1, limit=4
  $region2: #{mg_patch_embed_forward.1} parent=0 // loop_pre_header
    _
  $region3: #{mg_patch_embed_forward.1} parent=0 // loop_header
    %s15 = sphi 0, %s19
    %p16 = scmp.ge.s32.totalorder %s15, 4
    %s25 = sphi 0, %s27
    %s28 = sphi 0, %s25
    %s29 = sphi 0, %s28
    %s45 = sphi 0, %s29
    %s49 = sphi 0, %s49
    %s51 = sphi 0, %s49
    %s52 = sphi 0, %s51
    %s66 = sphi 0, %s52
    %s70 = sphi 0, %s70
    %s72 = sphi 0, %s70
    %s73 = sphi 0, %s72
    %s87 = sphi 0, %s73
    %s91 = sphi 0, %s91
    %s93 = sphi 0, %s91
    %s94 = sphi 0, %s93
    %s108 = sphi 0, %s94
    %s112 = sphi 0, %s112
    %s114 = sphi 0, %s112
    %s115 = sphi 0, %s114
    %s129 = sphi 0, %s115
    %s133 = sphi 0, %s133
    %s135 = sphi 0, %s133
    %s136 = sphi 0, %s135
    %s150 = sphi 0, %s136
    %s154 = sphi 0, %s154
    %s156 = sphi 0, %s154
    %s157 = sphi 0, %s156
    %s171 = sphi 0, %s157
    %s177 = sphi 0, %s179
    %s180 = sphi 0, %s177
    %s181 = sphi 0, %s180
    %s197 = sphi 0, %s181
    %s203 = sphi 0, %s205
    %s206 = sphi 0, %s203
    %s207 = sphi 0, %s206
    %s223 = sphi 0, %s207
  $region4: #{mg_patch_embed_forward.1} parent=0 // loop_header_branch
    %18 = sbr.rel (%p16) target = $region8
  $region5: #{mg_patch_embed_forward.1} parent=0 // loop_body
    %s20 = ssub.s32 %s15, 1
    %s21 = ssub.s32 %s15, 2
    %s22 = sadd.s32 %s15, 1
    %s23 = ssub.s32 %s15, %s22
    %p24 = scmp.eq.s32.totalorder %s23, 0
    %s26 = sadd.s32 %s25, 1
    %s27 = scalar_select %p24, %s25, %s26
    %p30 = pneg %p24
    %p31 = scmp.eq.s32.totalorder %s15, 1
    %p32 = por %p30, %p31
    %p33 = scmp.ne.s32.totalorder %s25, %s28
    %p34 = scmp.eq.s32.totalorder %s15, 0
    %p35 = por %p33, %p34
    %p36 = scmp.ne.s32.totalorder %s25, %s28
    %p37 = scmp.eq.s32.totalorder %s20, 1
    %p38 = por %p36, %p37
    %p39 = scmp.ne.s32.totalorder %s28, %s29
    %p40 = scmp.eq.s32.totalorder %s20, 0
    %p41 = por %p39, %p40
    %p42 = scmp.ne.s32.totalorder %s28, %s29
    %p43 = scmp.eq.s32.totalorder %s21, 1
    %p44 = por %p42, %p43
    %p46 = scmp.ne.s32.totalorder %s29, %s45
    %p47 = scmp.eq.s32.totalorder %s21, 0
    %p48 = por %p46, %p47
    %s50 = sadd.s32 %s49, 1
    %p53 = scmp.eq.s32.totalorder %s15, 1
    %p54 = scmp.ne.s32.totalorder %s49, %s51
    %p55 = scmp.eq.s32.totalorder %s15, 0
    %p56 = por %p54, %p55
    %p57 = scmp.ne.s32.totalorder %s49, %s51
    %p58 = scmp.eq.s32.totalorder %s20, 1
    %p59 = por %p57, %p58
    %p60 = scmp.ne.s32.totalorder %s51, %s52
    %p61 = scmp.eq.s32.totalorder %s20, 0
    %p62 = por %p60, %p61
    %p63 = scmp.ne.s32.totalorder %s51, %s52
    %p64 = scmp.eq.s32.totalorder %s21, 1
    %p65 = por %p63, %p64
    %p67 = scmp.ne.s32.totalorder %s52, %s66
    %p68 = scmp.eq.s32.totalorder %s21, 0
    %p69 = por %p67, %p68
    %s71 = sadd.s32 %s70, 1
    %p74 = scmp.eq.s32.totalorder %s15, 1
    %p75 = scmp.ne.s32.totalorder %s70, %s72
    %p76 = scmp.eq.s32.totalorder %s15, 0
    %p77 = por %p75, %p76
    %p78 = scmp.ne.s32.totalorder %s70, %s72
    %p79 = scmp.eq.s32.totalorder %s20, 1
    %p80 = por %p78, %p79
    %p81 = scmp.ne.s32.totalorder %s72, %s73
    %p82 = scmp.eq.s32.totalorder %s20, 0
    %p83 = por %p81, %p82
    %p84 = scmp.ne.s32.totalorder %s72, %s73
    %p85 = scmp.eq.s32.totalorder %s21, 1
    %p86 = por %p84, %p85
    %p88 = scmp.ne.s32.totalorder %s73, %s87
    %p89 = scmp.eq.s32.totalorder %s21, 0
    %p90 = por %p88, %p89
    %s92 = sadd.s32 %s91, 1
    %p95 = scmp.eq.s32.totalorder %s15, 1
    %p96 = scmp.ne.s32.totalorder %s91, %s93
    %p97 = scmp.eq.s32.totalorder %s15, 0
    %p98 = por %p96, %p97
    %p99 = scmp.ne.s32.totalorder %s91, %s93
    %p100 = scmp.eq.s32.totalorder %s20, 1
    %p101 = por %p99, %p100
    %p102 = scmp.ne.s32.totalorder %s93, %s94
    %p103 = scmp.eq.s32.totalorder %s20, 0
    %p104 = por %p102, %p103
    %p105 = scmp.ne.s32.totalorder %s93, %s94
    %p106 = scmp.eq.s32.totalorder %s21, 1
    %p107 = por %p105, %p106
    %p109 = scmp.ne.s32.totalorder %s94, %s108
    %p110 = scmp.eq.s32.totalorder %s21, 0
    %p111 = por %p109, %p110
    %s113 = sadd.s32 %s112, 1
    %p116 = scmp.eq.s32.totalorder %s15, 1
    %p117 = scmp.ne.s32.totalorder %s112, %s114
    %p118 = scmp.eq.s32.totalorder %s15, 0
    %p119 = por %p117, %p118
    %p120 = scmp.ne.s32.totalorder %s112, %s114
    %p121 = scmp.eq.s32.totalorder %s20, 1
    %p122 = por %p120, %p121
    %p123 = scmp.ne.s32.totalorder %s114, %s115
    %p124 = scmp.eq.s32.totalorder %s20, 0
    %p125 = por %p123, %p124
    %p126 = scmp.ne.s32.totalorder %s114, %s115
    %p127 = scmp.eq.s32.totalorder %s21, 1
    %p128 = por %p126, %p127
    %p130 = scmp.ne.s32.totalorder %s115, %s129
    %p131 = scmp.eq.s32.totalorder %s21, 0
    %p132 = por %p130, %p131
    %s134 = sadd.s32 %s133, 1
    %p137 = scmp.eq.s32.totalorder %s15, 1
    %p138 = scmp.ne.s32.totalorder %s133, %s135
    %p139 = scmp.eq.s32.totalorder %s15, 0
    %p140 = por %p138, %p139
    %p141 = scmp.ne.s32.totalorder %s133, %s135
    %p142 = scmp.eq.s32.totalorder %s20, 1
    %p143 = por %p141, %p142
    %p144 = scmp.ne.s32.totalorder %s135, %s136
    %p145 = scmp.eq.s32.totalorder %s20, 0
    %p146 = por %p144, %p145
    %p147 = scmp.ne.s32.totalorder %s135, %s136
    %p148 = scmp.eq.s32.totalorder %s21, 1
    %p149 = por %p147, %p148
    %p151 = scmp.ne.s32.totalorder %s136, %s150
    %p152 = scmp.eq.s32.totalorder %s21, 0
    %p153 = por %p151, %p152
    %s155 = sadd.s32 %s154, 1
    %p158 = scmp.eq.s32.totalorder %s15, 1
    %p159 = scmp.ne.s32.totalorder %s154, %s156
    %p160 = scmp.eq.s32.totalorder %s15, 0
    %p161 = por %p159, %p160
    %p162 = scmp.ne.s32.totalorder %s154, %s156
    %p163 = scmp.eq.s32.totalorder %s20, 1
    %p164 = por %p162, %p163
    %p165 = scmp.ne.s32.totalorder %s156, %s157
    %p166 = scmp.eq.s32.totalorder %s20, 0
    %p167 = por %p165, %p166
    %p168 = scmp.ne.s32.totalorder %s156, %s157
    %p169 = scmp.eq.s32.totalorder %s21, 1
    %p170 = por %p168, %p169
    %p172 = scmp.ne.s32.totalorder %s157, %s171
    %p173 = scmp.eq.s32.totalorder %s21, 0
    %p174 = por %p172, %p173
    %s175 = ssub.s32 %s15, %s22
    %p176 = scmp.eq.s32.totalorder %s175, 0
    %s178 = sadd.s32 %s177, 1
    %s179 = scalar_select %p176, %s177, %s178
    %p182 = pneg %p176
    %p183 = scmp.eq.s32.totalorder %s15, 1
    %p184 = por %p182, %p183
    %p185 = scmp.ne.s32.totalorder %s177, %s180
    %p186 = scmp.eq.s32.totalorder %s15, 0
    %p187 = por %p185, %p186
    %p188 = scmp.ne.s32.totalorder %s177, %s180
    %p189 = scmp.eq.s32.totalorder %s20, 1
    %p190 = por %p188, %p189
    %p191 = scmp.ne.s32.totalorder %s180, %s181
    %p192 = scmp.eq.s32.totalorder %s20, 0
    %p193 = por %p191, %p192
    %p194 = scmp.ne.s32.totalorder %s180, %s181
    %p195 = scmp.eq.s32.totalorder %s21, 1
    %p196 = por %p194, %p195
    %p198 = scmp.ne.s32.totalorder %s181, %s197
    %p199 = scmp.eq.s32.totalorder %s21, 0
    %p200 = por %p198, %p199
    %s201 = ssub.s32 %s15, %s22
    %p202 = scmp.eq.s32.totalorder %s201, 0
    %s204 = sadd.s32 %s203, 1
    %s205 = scalar_select %p202, %s203, %s204
    %p208 = pneg %p202
    %p209 = scmp.eq.s32.totalorder %s15, 1
    %p210 = por %p208, %p209
    %p211 = scmp.ne.s32.totalorder %s203, %s206
    %p212 = scmp.eq.s32.totalorder %s15, 0
    %p213 = por %p211, %p212
    %p214 = scmp.ne.s32.totalorder %s203, %s206
    %p215 = scmp.eq.s32.totalorder %s20, 1
    %p216 = por %p214, %p215
    %p217 = scmp.ne.s32.totalorder %s206, %s207
    %p218 = scmp.eq.s32.totalorder %s20, 0
    %p219 = por %p217, %p218
    %p220 = scmp.ne.s32.totalorder %s206, %s207
    %p221 = scmp.eq.s32.totalorder %s21, 1
    %p222 = por %p220, %p221
    %p224 = scmp.ne.s32.totalorder %s207, %s223
    %p225 = scmp.eq.s32.totalorder %s21, 0
    %p226 = por %p224, %p225
    %p227 = scmp.le.s32.totalorder 1, %s15
    %p228 = scmp.lt.s32.totalorder %s15, 3
    %p229 = pnand %p227, %p228
    %p230 = pneg %p229
    // Predicated region
    $region9: #{mg_patch_embed_forward.1} parent=5 // pred_check
      _
    $region10: #{mg_patch_embed_forward.1} parent=5 // pred_check_branch
      %232 = sbr.rel (%p229) target = $region12
    $region11: #{mg_patch_embed_forward.1} parent=5 // pred_region
      %s233 = ssub.s32 %s15, 1
      // Predicated region
      $region13: #{mg_patch_embed_forward.1} parent=11 // pred_check
        %p234 = pneg %p62
      $region14: #{mg_patch_embed_forward.1} parent=11 // pred_check_branch
        %236 = sbr.rel (%p234) target = $region16
      $region15: #{mg_patch_embed_forward.1} parent=11 // pred_region
        _
      $region16: #{mg_patch_embed_forward.1} parent=11 // pred_fallthru
        _
      // Predicated region
      $region17: #{mg_patch_embed_forward.1} parent=11 // pred_check
        %p237 = pneg %p83
      $region18: #{mg_patch_embed_forward.1} parent=11 // pred_check_branch
        %239 = sbr.rel (%p237) target = $region20
      $region19: #{mg_patch_embed_forward.1} parent=11 // pred_region
        _
      $region20: #{mg_patch_embed_forward.1} parent=11 // pred_fallthru
        _
      // Predicated region
      $region21: #{mg_patch_embed_forward.1} parent=11 // pred_check
        %p240 = pneg %p104
      $region22: #{mg_patch_embed_forward.1} parent=11 // pred_check_branch
        %242 = sbr.rel (%p240) target = $region24
      $region23: #{mg_patch_embed_forward.1} parent=11 // pred_region
        _
      $region24: #{mg_patch_embed_forward.1} parent=11 // pred_fallthru
        _
      // Predicated region
      $region25: #{mg_patch_embed_forward.1} parent=11 // pred_check
        %p243 = pneg %p125
      $region26: #{mg_patch_embed_forward.1} parent=11 // pred_check_branch
        %245 = sbr.rel (%p243) target = $region28
      $region27: #{mg_patch_embed_forward.1} parent=11 // pred_region
        _
      $region28: #{mg_patch_embed_forward.1} parent=11 // pred_fallthru
        _
      // Predicated region
      $region29: #{mg_patch_embed_forward.1} parent=11 // pred_check
        %p246 = pneg %p146
      $region30: #{mg_patch_embed_forward.1} parent=11 // pred_check_branch
        %248 = sbr.rel (%p246) target = $region32
      $region31: #{mg_patch_embed_forward.1} parent=11 // pred_region
        _
      $region32: #{mg_patch_embed_forward.1} parent=11 // pred_fallthru
        _
      // Predicated region
      $region33: #{mg_patch_embed_forward.1} parent=11 // pred_check
        %p249 = pneg %p167
      $region34: #{mg_patch_embed_forward.1} parent=11 // pred_check_branch
        %251 = sbr.rel (%p249) target = $region36
      $region35: #{mg_patch_embed_forward.1} parent=11 // pred_region
        _
      $region36: #{mg_patch_embed_forward.1} parent=11 // pred_fallthru
        _
    $region12: #{mg_patch_embed_forward.1} parent=5 // pred_fallthru
      _
    %p252 = scmp.lt.s32.totalorder %s15, 2
    // Predicated region
    $region37: #{mg_patch_embed_forward.1} parent=5 // pred_check
      %p253 = pneg %p252
    $region38: #{mg_patch_embed_forward.1} parent=5 // pred_check_branch
      %255 = sbr.rel (%p253) target = $region40
    $region39: #{mg_patch_embed_forward.1} parent=5 // pred_region
      // Predicated region
      $region41: #{mg_patch_embed_forward.1} parent=39 // pred_check
        %p256 = pneg %p35
      $region42: #{mg_patch_embed_forward.1} parent=39 // pred_check_branch
        %258 = sbr.rel (%p256) target = $region44
      $region43: #{mg_patch_embed_forward.1} parent=39 // pred_region
        %s259 = smul.u32 8, %s15
        %p260 = scmp.lt.s32.totalorder %s259, 15
        %s261 = scalar_select %p260, %s259, 15
        %s262 = smul.addr %s261, 8
        %s263 = scalar_lea.vmem %s0, %s262
        %s264 = smul.u32 8, %s15
      $region44: #{mg_patch_embed_forward.1} parent=39 // pred_fallthru
        _
    $region40: #{mg_patch_embed_forward.1} parent=5 // pred_fallthru
      _
    %p265 = scmp.le.s32.totalorder 1, %s15
    %p266 = scmp.lt.s32.totalorder %s15, 3
    %p267 = pnand %p265, %p266
    %p268 = pneg %p267
    // Predicated region
    $region45: #{mg_patch_embed_forward.1} parent=5 // pred_check
      _
    $region46: #{mg_patch_embed_forward.1} parent=5 // pred_check_branch
      %270 = sbr.rel (%p267) target = $region48
    $region47: #{mg_patch_embed_forward.1} parent=5 // pred_region
      %s271 = ssub.s32 %s15, 1
      %s272 = smul.u32 8, %s20
      %p273 = scmp.lt.s32.totalorder %s272, 15
      %s274 = scalar_select %p273, %s272, 15
      %s275 = smul.addr %s274, 8
      %s276 = scalar_lea.vmem %s0, %s275
      %p277 = pneg %p41
      %p278 = pneg %p38
      %p279 = pneg %p62
      %p280 = pneg %p59
      %p281 = pneg %p83
      %p282 = pneg %p80
      %p283 = pneg %p104
      %p284 = pneg %p101
      %p285 = pneg %p125
      %p286 = pneg %p122
      %p287 = pneg %p146
      %p288 = pneg %p143
      %p289 = pneg %p167
      %p290 = pneg %p164
      %p291 = pneg %p193
      %p292 = pneg %p190
      %s293 = smul.u32 8, %s20
      %p294 = scmp.lt.s32.totalorder %s293, 15
      %s295 = scalar_select %p294, %s293, 15
      %s296 = smul.addr %s295, 8
      %s297 = scalar_lea.vmem %s7, %s296
      %p298 = pneg %p219
      %p299 = pneg %p216
      %s300 = smul.u32 8, %s20
      %p301 = scmp.lt.s32.totalorder %s300, 15
      %s302 = scalar_select %p301, %s300, 15
      %s303 = smul.addr %s302, 8
      %s304 = scalar_lea.vmem %s8, %s303
      %s305 = smul.u32 8, %s20
      %p306 = scmp.lt.s32.totalorder %s305, 15
      %s307 = scalar_select %p306, %s305, 15
      %s308 = smul.addr %s307, 8
      %s309 = scalar_lea.vmem %s0, %s308
      %s310 = smul.u32 8, %s20
      %s311 = smul.u32 8, %s20
      %p312 = scmp.lt.s32.totalorder %s311, 15
      %s313 = scalar_select %p312, %s311, 15
      %s314 = smul.addr %s313, 8
      %s315 = scalar_lea.vmem %s7, %s314
      %s316 = smul.u32 8, %s20
      %s317 = smul.u32 8, %s20
      %p318 = scmp.lt.s32.totalorder %s317, 15
      %s319 = scalar_select %p318, %s317, 15
      %s320 = smul.addr %s319, 8
      %s321 = scalar_lea.vmem %s8, %s320
      %s322 = smul.u32 8, %s20
      %v323 = vld [vmem:[%s309] sm:$0xff]
      %v324 = vld [vmem:[%s309 + $0x8] sm:$0xff]
      %v325 = vld [vmem:[%s309 + $0x10] sm:$0xff]
      %v326 = vld [vmem:[%s309 + $0x18] sm:$0xff]
      %v327 = vld [vmem:[%s309 + $0x20] sm:$0xff]
      %v328 = vld [vmem:[%s309 + $0x28] sm:$0xff]
      %v329 = vld [vmem:[%s309 + $0x30] sm:$0xff]
      %v330 = vld [vmem:[%s309 + $0x38] sm:$0xff]
      %v331 = vld [vmem:[%s1] sm:$0xff]
      %v332 = vld [vmem:[%s1 + $0x8] sm:$0xff]
      %v333 = vld [vmem:[%s1 + $0x10] sm:$0xff]
      %v334 = vld [vmem:[%s1 + $0x18] sm:$0xff]
      %v335 = vld [vmem:[%s1 + $0x20] sm:$0xff]
      %v336 = vld [vmem:[%s1 + $0x28] sm:$0xff]
      %v337 = vld [vmem:[%s2] sm:$0x1]
      %v338 = vld [vmem:[%s3] sm:$0x1]
      %v339 = vld [vmem:[%s4] sm:$0x1]
      %v341 = vperm.slane %v337, 0
      %vm343 = vcmask 392192
      %v345 = vsel %vm343, %v323, 0
      %v348 = vsel %vm343, %v324, 0
      %v351 = vsel %vm343, %v325, 0
      %v354 = vsel %vm343, %v326, 0
      %v357 = vsel %vm343, %v327, 0
      %v360 = vsel %vm343, %v328, 0
      %v363 = vsel %vm343, %v329, 0
      %v366 = vsel %vm343, %v330, 0
      %368 = vmatpush.msra.mxu0 0.0
      %369 = vmatpush.msra.mxu0 0.0
      %370 = vmatpush.msra.mxu0 0.0
      %371 = vmatpush.msra.mxu0 0.0
      %372 = vmatpush.msra.mxu0 0.0
      %373 = vmatpush.msra.mxu0 0.0
      %374 = vmatpush.msra.mxu0 0.0
      %375 = vmatpush.msra.mxu0 0.0
      %376 = vmatpush.msra.mxu0 0.0
      %377 = vmatpush.msra.mxu0 0.0
      %378 = vmatpush.msra.mxu0 %v336
      %379 = vmatpush.msra.mxu0 %v335
      %380 = vmatpush.msra.mxu0 %v334
      %381 = vmatpush.msra.mxu0 %v333
      %382 = vmatpush.msra.mxu0 %v332
      %383 = vmatpush.msra.mxu0 %v331
      %384 = vmatmul.f32.gmra.mxu0 %v345
      %v385 = vpop.f32.mrf.mxu0
      %v386 = vadd.f32 %v341, %v385
      %387 = vmatmul.f32.gmra.mxu0 %v348
      %v388 = vpop.f32.mrf.mxu0
      %v389 = vadd.f32 %v341, %v388
      %390 = vmatmul.f32.gmra.mxu0 %v351
      %v391 = vpop.f32.mrf.mxu0
      %v392 = vadd.f32 %v341, %v391
      %393 = vmatmul.f32.gmra.mxu0 %v354
      %v394 = vpop.f32.mrf.mxu0
      %v395 = vadd.f32 %v341, %v394
      %396 = vmatmul.f32.gmra.mxu0 %v357
      %v397 = vpop.f32.mrf.mxu0
      %v398 = vadd.f32 %v341, %v397
      %399 = vmatmul.f32.gmra.mxu0 %v360
      %v400 = vpop.f32.mrf.mxu0
      %v401 = vadd.f32 %v341, %v400
      %402 = vmatmul.f32.gmra.mxu0 %v363
      %v403 = vpop.f32.mrf.mxu0
      %v404 = vadd.f32 %v341, %v403
      %405 = vmatmul.f32.gmra.mxu0 %v366
      %v406 = vpop.f32.mrf.mxu0
      %v407 = vadd.f32 %v341, %v406
      %408 = vdwg.mxu0
      %409 = vadd.xlane.f32.xlu0 %v386
      %v410 = vpop.xlane.xlu0 %409
      %411 = vadd.xlane.f32.xlu0 %v389
      %v412 = vpop.xlane.xlu0 %411
      %413 = vadd.xlane.f32.xlu0 %v392
      %v414 = vpop.xlane.xlu0 %413
      %415 = vadd.xlane.f32.xlu0 %v395
      %v416 = vpop.xlane.xlu0 %415
      %417 = vadd.xlane.f32.xlu0 %v398
      %v418 = vpop.xlane.xlu0 %417
      %419 = vadd.xlane.f32.xlu0 %v401
      %v420 = vpop.xlane.xlu0 %419
      %421 = vadd.xlane.f32.xlu0 %v404
      %v422 = vpop.xlane.xlu0 %421
      %423 = vadd.xlane.f32.xlu0 %v407
      %v424 = vpop.xlane.xlu0 %423
      %v425 = vmul.f32 %v410, 0.0078125
      %v426 = vmul.f32 %v412, 0.0078125
      %v427 = vmul.f32 %v414, 0.0078125
      %v428 = vmul.f32 %v416, 0.0078125
      %v429 = vmul.f32 %v418, 0.0078125
      %v430 = vmul.f32 %v420, 0.0078125
      %v431 = vmul.f32 %v422, 0.0078125
      %v432 = vmul.f32 %v424, 0.0078125
      %v433 = vsub.f32 %v386, %v425
      %v434 = vsub.f32 %v389, %v426
      %v435 = vsub.f32 %v392, %v427
      %v436 = vsub.f32 %v395, %v428
      %v437 = vsub.f32 %v398, %v429
      %v438 = vsub.f32 %v401, %v430
      %v439 = vsub.f32 %v404, %v431
      %v440 = vsub.f32 %v407, %v432
      %v441 = vmul.f32 %v433, %v433
      %v442 = vmul.f32 %v434, %v434
      %v443 = vmul.f32 %v435, %v435
      %v444 = vmul.f32 %v436, %v436
      %v445 = vmul.f32 %v437, %v437
      %v446 = vmul.f32 %v438, %v438
      %v447 = vmul.f32 %v439, %v439
      %v448 = vmul.f32 %v440, %v440
      %449 = vadd.xlane.f32.xlu0 %v441
      %v450 = vpop.xlane.xlu0 %449
      %451 = vadd.xlane.f32.xlu0 %v442
      %v452 = vpop.xlane.xlu0 %451
      %453 = vadd.xlane.f32.xlu0 %v443
      %v454 = vpop.xlane.xlu0 %453
      %455 = vadd.xlane.f32.xlu0 %v444
      %v456 = vpop.xlane.xlu0 %455
      %457 = vadd.xlane.f32.xlu0 %v445
      %v458 = vpop.xlane.xlu0 %457
      %459 = vadd.xlane.f32.xlu0 %v446
      %v460 = vpop.xlane.xlu0 %459
      %461 = vadd.xlane.f32.xlu0 %v447
      %v462 = vpop.xlane.xlu0 %461
      %463 = vadd.xlane.f32.xlu0 %v448
      %v464 = vpop.xlane.xlu0 %463
      %v465 = vmul.f32 %v450, 0.0078125
      %v466 = vmul.f32 %v452, 0.0078125
      %v467 = vmul.f32 %v454, 0.0078125
      %v468 = vmul.f32 %v456, 0.0078125
      %v469 = vmul.f32 %v458, 0.0078125
      %v470 = vmul.f32 %v460, 0.0078125
      %v471 = vmul.f32 %v462, 0.0078125
      %v472 = vmul.f32 %v464, 0.0078125
      %v473 = vadd.f32 %v465, 1e-05
      %v474 = vadd.f32 %v466, 1e-05
      %v475 = vadd.f32 %v467, 1e-05
      %v476 = vadd.f32 %v468, 1e-05
      %v477 = vadd.f32 %v469, 1e-05
      %v478 = vadd.f32 %v470, 1e-05
      %v479 = vadd.f32 %v471, 1e-05
      %v480 = vadd.f32 %v472, 1e-05
      %v481 = vrsqrt.pop %v473
      %v482 = vmul.f32 %v481, %v473
      %v483 = vmul.f32 %v482, %v481
      %v484 = vmul.f32 0.5, %v483
      %v485 = vsub.f32 1.5, %v484
      %v486 = vmul.f32 %v481, %v485
      %vm487 = vweird.f32 %v473
      %vm488 = vweird.f32 %v481
      %vm489 = vmor %vm487, %vm488
      %v490 = vsel %vm489, %v481, %v486
      %v491 = vrsqrt.pop %v474
      %v492 = vmul.f32 %v491, %v474
      %v493 = vmul.f32 %v492, %v491
      %v494 = vmul.f32 0.5, %v493
      %v495 = vsub.f32 1.5, %v494
      %v496 = vmul.f32 %v491, %v495
      %vm497 = vweird.f32 %v474
      %vm498 = vweird.f32 %v491
      %vm499 = vmor %vm497, %vm498
      %v500 = vsel %vm499, %v491, %v496
      %v501 = vrsqrt.pop %v475
      %v502 = vmul.f32 %v501, %v475
      %v503 = vmul.f32 %v502, %v501
      %v504 = vmul.f32 0.5, %v503
      %v505 = vsub.f32 1.5, %v504
      %v506 = vmul.f32 %v501, %v505
      %vm507 = vweird.f32 %v475
      %vm508 = vweird.f32 %v501
      %vm509 = vmor %vm507, %vm508
      %v510 = vsel %vm509, %v501, %v506
      %v511 = vrsqrt.pop %v476
      %v512 = vmul.f32 %v511, %v476
      %v513 = vmul.f32 %v512, %v511
      %v514 = vmul.f32 0.5, %v513
      %v515 = vsub.f32 1.5, %v514
      %v516 = vmul.f32 %v511, %v515
      %vm517 = vweird.f32 %v476
      %vm518 = vweird.f32 %v511
      %vm519 = vmor %vm517, %vm518
      %v520 = vsel %vm519, %v511, %v516
      %v521 = vrsqrt.pop %v477
      %v522 = vmul.f32 %v521, %v477
      %v523 = vmul.f32 %v522, %v521
      %v524 = vmul.f32 0.5, %v523
      %v525 = vsub.f32 1.5, %v524
      %v526 = vmul.f32 %v521, %v525
      %vm527 = vweird.f32 %v477
      %vm528 = vweird.f32 %v521
      %vm529 = vmor %vm527, %vm528
      %v530 = vsel %vm529, %v521, %v526
      %v531 = vrsqrt.pop %v478
      %v532 = vmul.f32 %v531, %v478
      %v533 = vmul.f32 %v532, %v531
      %v534 = vmul.f32 0.5, %v533
      %v535 = vsub.f32 1.5, %v534
      %v536 = vmul.f32 %v531, %v535
      %vm537 = vweird.f32 %v478
      %vm538 = vweird.f32 %v531
      %vm539 = vmor %vm537, %vm538
      %v540 = vsel %vm539, %v531, %v536
      %v541 = vrsqrt.pop %v479
      %v542 = vmul.f32 %v541, %v479
      %v543 = vmul.f32 %v542, %v541
      %v544 = vmul.f32 0.5, %v543
      %v545 = vsub.f32 1.5, %v544
      %v546 = vmul.f32 %v541, %v545
      %vm547 = vweird.f32 %v479
      %vm548 = vweird.f32 %v541
      %vm549 = vmor %vm547, %vm548
      %v550 = vsel %vm549, %v541, %v546
      %v551 = vrsqrt.pop %v480
      %v552 = vmul.f32 %v551, %v480
      %v553 = vmul.f32 %v552, %v551
      %v554 = vmul.f32 0.5, %v553
      %v555 = vsub.f32 1.5, %v554
      %v556 = vmul.f32 %v551, %v555
      %vm557 = vweird.f32 %v480
      %vm558 = vweird.f32 %v551
      %vm559 = vmor %vm557, %vm558
      %v560 = vsel %vm559, %v551, %v556
      %v561 = vmul.f32 %v433, %v490
      %v562 = vmul.f32 %v434, %v500
      %v563 = vmul.f32 %v435, %v510
      %v564 = vmul.f32 %v436, %v520
      %v565 = vmul.f32 %v437, %v530
      %v566 = vmul.f32 %v438, %v540
      %v567 = vmul.f32 %v439, %v550
      %v568 = vmul.f32 %v440, %v560
      %v570 = vperm.slane %v338, 0
      %v572 = vmul.f32 %v561, %v570
      %v573 = vmul.f32 %v562, %v570
      %v574 = vmul.f32 %v563, %v570
      %v575 = vmul.f32 %v564, %v570
      %v576 = vmul.f32 %v565, %v570
      %v577 = vmul.f32 %v566, %v570
      %v578 = vmul.f32 %v567, %v570
      %v579 = vmul.f32 %v568, %v570
      %v581 = vperm.slane %v339, 0
      %v583 = vadd.f32 %v572, %v581
      %v584 = vadd.f32 %v573, %v581
      %v585 = vadd.f32 %v574, %v581
      %v586 = vadd.f32 %v575, %v581
      %v587 = vadd.f32 %v576, %v581
      %v588 = vadd.f32 %v577, %v581
      %v589 = vadd.f32 %v578, %v581
      %v590 = vadd.f32 %v579, %v581
      %591 = vst [vmem:[%s315] sm:$0xff] %v583
      %592 = vst [vmem:[%s315 + $0x8] sm:$0xff] %v584
      %593 = vst [vmem:[%s315 + $0x10] sm:$0xff] %v585
      %594 = vst [vmem:[%s315 + $0x18] sm:$0xff] %v586
      %595 = vst [vmem:[%s315 + $0x20] sm:$0xff] %v587
      %596 = vst [vmem:[%s315 + $0x28] sm:$0xff] %v588
      %597 = vst [vmem:[%s315 + $0x30] sm:$0xff] %v589
      %598 = vst [vmem:[%s315 + $0x38] sm:$0xff] %v590
      %v599 = vld [vmem:[%s5] sm:$0xff]
      %v600 = vld [vmem:[%s5 + $0x8] sm:$0xff]
      %v601 = vld [vmem:[%s5 + $0x10] sm:$0xff]
      %v602 = vld [vmem:[%s5 + $0x18] sm:$0xff]
      %v603 = vld [vmem:[%s5 + $0x20] sm:$0xff]
      %v604 = vld [vmem:[%s5 + $0x28] sm:$0xff]
      %v605 = vld [vmem:[%s5 + $0x30] sm:$0xff]
      %v606 = vld [vmem:[%s5 + $0x38] sm:$0xff]
      %v607 = vld [vmem:[%s5 + $0x40] sm:$0xff]
      %v608 = vld [vmem:[%s5 + $0x48] sm:$0xff]
      %v609 = vld [vmem:[%s5 + $0x50] sm:$0xff]
      %v610 = vld [vmem:[%s5 + $0x58] sm:$0xff]
      %v611 = vld [vmem:[%s5 + $0x60] sm:$0xff]
      %v612 = vld [vmem:[%s5 + $0x68] sm:$0xff]
      %v613 = vld [vmem:[%s5 + $0x70] sm:$0xff]
      %v614 = vld [vmem:[%s5 + $0x78] sm:$0xff]
      %v615 = vld [vmem:[%s6] sm:$0x1]
      %v617 = vperm.slane %v615, 0
      %619 = vmatpush.msra.mxu0 %v614
      %620 = vmatpush.msra.mxu0 %v613
      %621 = vmatpush.msra.mxu0 %v612
      %622 = vmatpush.msra.mxu0 %v611
      %623 = vmatpush.msra.mxu0 %v610
      %624 = vmatpush.msra.mxu0 %v609
      %625 = vmatpush.msra.mxu0 %v608
      %626 = vmatpush.msra.mxu0 %v607
      %627 = vmatpush.msra.mxu0 %v606
      %628 = vmatpush.msra.mxu0 %v605
      %629 = vmatpush.msra.mxu0 %v604
      %630 = vmatpush.msra.mxu0 %v603
      %631 = vmatpush.msra.mxu0 %v602
      %632 = vmatpush.msra.mxu0 %v601
      %633 = vmatpush.msra.mxu0 %v600
      %634 = vmatpush.msra.mxu0 %v599
      %635 = vmatmul.f32.gmra.mxu0 %v386
      %v636 = vpop.f32.mrf.mxu0
      %v637 = vadd.f32 %v617, %v636
      %638 = vmatmul.f32.gmra.mxu0 %v389
      %v639 = vpop.f32.mrf.mxu0
      %v640 = vadd.f32 %v617, %v639
      %641 = vmatmul.f32.gmra.mxu0 %v392
      %v642 = vpop.f32.mrf.mxu0
      %v643 = vadd.f32 %v617, %v642
      %644 = vmatmul.f32.gmra.mxu0 %v395
      %v645 = vpop.f32.mrf.mxu0
      %v646 = vadd.f32 %v617, %v645
      %647 = vmatmul.f32.gmra.mxu0 %v398
      %v648 = vpop.f32.mrf.mxu0
      %v649 = vadd.f32 %v617, %v648
      %650 = vmatmul.f32.gmra.mxu0 %v401
      %v651 = vpop.f32.mrf.mxu0
      %v652 = vadd.f32 %v617, %v651
      %653 = vmatmul.f32.gmra.mxu0 %v404
      %v654 = vpop.f32.mrf.mxu0
      %v655 = vadd.f32 %v617, %v654
      %656 = vmatmul.f32.gmra.mxu0 %v407
      %v657 = vpop.f32.mrf.mxu0
      %v658 = vadd.f32 %v617, %v657
      %659 = vdwg.mxu0
      %vm660 = vcmask 23552
      %661 = vst.msk [vmem:[%s321] sm:$0xff] %vm660, %v637
      %662 = vst.msk [vmem:[%s321 + $0x8] sm:$0xff] %vm660, %v640
      %663 = vst.msk [vmem:[%s321 + $0x10] sm:$0xff] %vm660, %v643
      %664 = vst.msk [vmem:[%s321 + $0x18] sm:$0xff] %vm660, %v646
      %665 = vst.msk [vmem:[%s321 + $0x20] sm:$0xff] %vm660, %v649
      %666 = vst.msk [vmem:[%s321 + $0x28] sm:$0xff] %vm660, %v652
      %667 = vst.msk [vmem:[%s321 + $0x30] sm:$0xff] %vm660, %v655
      %668 = vst.msk [vmem:[%s321 + $0x38] sm:$0xff] %vm660, %v658
      %s669 = smul.u32 8, %s20
      %p670 = scmp.lt.s32.totalorder %s669, 15
      %s671 = scalar_select %p670, %s669, 15
      %s672 = smul.addr %s671, 8
      %s673 = scalar_lea.vmem %s7, %s672
      %s674 = smul.u32 8, %s20
      %p675 = scmp.lt.s32.totalorder %s674, 15
      %s676 = scalar_select %p675, %s674, 15
      %s677 = smul.addr %s676, 8
      %s678 = scalar_lea.vmem %s8, %s677
      // Predicated region
      $region49: #{mg_patch_embed_forward.1} parent=47 // pred_check
        %p679 = pneg %p190
      $region50: #{mg_patch_embed_forward.1} parent=47 // pred_check_branch
        %681 = sbr.rel (%p679) target = $region52
      $region51: #{mg_patch_embed_forward.1} parent=47 // pred_region
        %s682 = smul.u32 8, %s20
      $region52: #{mg_patch_embed_forward.1} parent=47 // pred_fallthru
        _
      // Predicated region
      $region53: #{mg_patch_embed_forward.1} parent=47 // pred_check
        %p683 = pneg %p216
      $region54: #{mg_patch_embed_forward.1} parent=47 // pred_check_branch
        %685 = sbr.rel (%p683) target = $region56
      $region55: #{mg_patch_embed_forward.1} parent=47 // pred_region
        %s686 = smul.u32 8, %s20
      $region56: #{mg_patch_embed_forward.1} parent=47 // pred_fallthru
        _
    $region48: #{mg_patch_embed_forward.1} parent=5 // pred_fallthru
      _
    %p687 = scmp.le.s32.totalorder 2, %s15
    // Predicated region
    $region57: #{mg_patch_embed_forward.1} parent=5 // pred_check
      %p688 = pneg %p687
    $region58: #{mg_patch_embed_forward.1} parent=5 // pred_check_branch
      %690 = sbr.rel (%p688) target = $region60
    $region59: #{mg_patch_embed_forward.1} parent=5 // pred_region
      %s691 = ssub.s32 %s15, 2
      // Predicated region
      $region61: #{mg_patch_embed_forward.1} parent=59 // pred_check
        %p692 = pneg %p196
      $region62: #{mg_patch_embed_forward.1} parent=59 // pred_check_branch
        %694 = sbr.rel (%p692) target = $region64
      $region63: #{mg_patch_embed_forward.1} parent=59 // pred_region
        %s695 = smul.u32 8, %s21
        %p696 = scmp.lt.s32.totalorder %s695, 15
        %s697 = scalar_select %p696, %s695, 15
        %s698 = smul.addr %s697, 8
        %s699 = scalar_lea.vmem %s7, %s698
      $region64: #{mg_patch_embed_forward.1} parent=59 // pred_fallthru
        _
      // Predicated region
      $region65: #{mg_patch_embed_forward.1} parent=59 // pred_check
        %p700 = pneg %p222
      $region66: #{mg_patch_embed_forward.1} parent=59 // pred_check_branch
        %702 = sbr.rel (%p700) target = $region68
      $region67: #{mg_patch_embed_forward.1} parent=59 // pred_region
        %s703 = smul.u32 8, %s21
        %p704 = scmp.lt.s32.totalorder %s703, 15
        %s705 = scalar_select %p704, %s703, 15
        %s706 = smul.addr %s705, 8
        %s707 = scalar_lea.vmem %s8, %s706
      $region68: #{mg_patch_embed_forward.1} parent=59 // pred_fallthru
        _
    $region60: #{mg_patch_embed_forward.1} parent=5 // pred_fallthru
      _
  $region6: #{mg_patch_embed_forward.1} parent=0 // loop_footer
    %s19 = sadd.s32 1, %s15
  $region7: #{mg_patch_embed_forward.1} parent=0 // loop_footer_branch
    %14 = sbr.rel target = $region3
  $region8: #{mg_patch_embed_forward.1} parent=0 // loop_exit
    _

</llo_original>
